<compile_context>
chip_gen: v6e
topology: v6e:2x2x1
jax: 0.10.0
libtpu: 0.0.40
codegen_flags: <defaults>
</compile_context>

<pallas_src>
import functools

import jax
import jax.numpy as jnp
from jax.experimental import pallas as pl
from jax.experimental.pallas import tpu as pltpu


def _attention_head_kernel(x_ref, wq_ref, wk_ref, wv_ref, wo_ref, bo_ref, et_ref,
                           o_ref, acc_ref, *, seq_len, num_shift_bits):
    """One grid step == one (batch, head) pair.  Head axis accumulates."""
    h = pl.program_id(1)
    n = seq_len

    x = x_ref[0]            # (n, dim)       bf16
    wq = wq_ref[0]          # (dim, d)       bf16, softmax scale folded in
    wk = wk_ref[0]          # (dim, d)       bf16
    wv = wv_ref[0]          # (dim, d)       bf16
    wo = wo_ref[0]          # (d, dim)       bf16

    # Per-head projections on the MXU (bf16 operands, f32 accumulation).
    q = jnp.dot(x, wq, preferred_element_type=jnp.float32)     # (n, d), scaled
    k = jnp.dot(x, wk, preferred_element_type=jnp.float32)     # (n, d)
    v = jnp.dot(x, wv, preferred_element_type=jnp.float32)     # (n, d)
    q_bf = q.astype(jnp.bfloat16)
    k_bf = k.astype(jnp.bfloat16)
    v_bf = v.astype(jnp.bfloat16)

    # Content logits (n, n): q @ k^T on the MXU.
    dots = jnp.einsum('id,jd->ij', q_bf, k_bf,
                      preferred_element_type=jnp.float32)

    # Relative-position logits: one MXU matmul against the small rearranged
    # (d, W) embedding table, then the relative shift.  Row i needs a rotation
    # by i columns; it is applied with log2(n) static rolls + selects (bit
    # decomposition of the row index), all well-supported vector ops.
    z = jnp.dot(q_bf, et_ref[...], preferred_element_type=jnp.float32)   # (n, W)
    row = jax.lax.broadcasted_iota(jnp.int32, (n, 1), 0)
    for bit in range(num_shift_bits):
        amt = 1 << bit
        z = jnp.where((row & amt) != 0, jnp.roll(z, amt, axis=1), z)
    pos = z[:, :n]                                                       # (n, n)

    # Numerically stable softmax in f32; reciprocal on the EUP slot.
    logits = dots + pos
    logits = logits - jnp.max(logits, axis=-1, keepdims=True)
    p = jnp.exp(logits)
    attn = p * pl.reciprocal(jnp.sum(p, axis=-1, keepdims=True), approx=True)

    # attn @ V and this head's slice of the output projection, accumulated.
    out_h = jnp.dot(attn.astype(jnp.bfloat16), v_bf,
                    preferred_element_type=jnp.float32)                  # (n, d)
    contrib = jnp.dot(out_h.astype(jnp.bfloat16), wo,
                      preferred_element_type=jnp.float32)                # (n, dim)

    @pl.when(h == 0)
    def _():
        acc_ref[...] = jnp.broadcast_to(bo_ref[...], acc_ref.shape).astype(jnp.float32)

    acc_ref[...] += contrib

    @pl.when(h == pl.num_programs(1) - 1)
    def _():
        o_ref[0] = acc_ref[...].astype(o_ref.dtype)


def _build_rel_table(emb_table, n, max_pos_emb, dtype):
    """Rearrange the (2p+1, d) table into a (d, W) matrix so that, with
    z = q @ table and row i of z rotated right by i columns, column j (< n)
    equals q_i . emb[clip(i-j, -p, p) + p]."""
    w = ((2 * n - 1 + 127) // 128) * 128           # lane-aligned, >= 2n-1
    m = jnp.arange(w)
    rel = jnp.where(m <= n - 1, -m, w - m)         # relative distance i - j
    valid = (m <= n - 1) | (m >= w - n + 1)
    idx = jnp.clip(rel, -max_pos_emb, max_pos_emb) + max_pos_emb
    cols = jnp.where(valid[:, None], emb_table[idx], 0.0)   # (W, d)
    return cols.T.astype(dtype), w


def attention_forward(x, params, *, heads, dim_head, max_pos_emb):
    """x: (B, n, dim).  Self-attention, no mask, eval-mode dropout."""
    B, n, dim = x.shape
    inner = heads * dim_head
    scale = dim_head ** (-0.5)
    compute_dtype = jnp.bfloat16

    wq, wkv, wo, bo = params["wq"], params["wkv"], params["wo"], params["bo"]

    # Host-side weight prep (tiny): fold scale into Wq, split per head, bf16.
    def per_head_in(w):                            # (dim, inner) -> (h, dim, d)
        return w.reshape(dim, heads, dim_head).transpose(1, 0, 2)

    wq_h = per_head_in(wq * scale).astype(compute_dtype)
    wk_h = per_head_in(wkv[:, :inner]).astype(compute_dtype)
    wv_h = per_head_in(wkv[:, inner:]).astype(compute_dtype)
    wo_h = wo.reshape(heads, dim_head, dim).astype(compute_dtype)
    bo2 = bo.reshape(1, dim).astype(jnp.float32)

    et, w_cols = _build_rel_table(params["rel_pos_emb"], n, max_pos_emb,
                                  compute_dtype)
    x_bf = x.astype(compute_dtype)

    num_shift_bits = (n - 1).bit_length()

    kernel = functools.partial(_attention_head_kernel, seq_len=n,
                               num_shift_bits=num_shift_bits)

    flops_per_step = (3 * 2 * n * dim * dim_head      # q/k/v projections
                      + 2 * n * dim_head * w_cols     # rel-pos logits
                      + 2 * n * n * dim_head          # q @ k^T
                      + 2 * n * n * dim_head          # attn @ v
                      + 2 * n * dim_head * dim)       # output projection
    weight_bytes = (wq_h.size + wk_h.size + wv_h.size + wo_h.size) * 2
    cost = pl.CostEstimate(
        flops=int(B * heads * flops_per_step),
        transcendentals=int(B * heads * n * n),
        bytes_accessed=int(x_bf.size * 2 + B * weight_bytes + B * n * dim * 4
                           + et.size * 2 + bo2.size * 4),
    )

    return pl.pallas_call(
        kernel,
        out_shape=jax.ShapeDtypeStruct((B, n, dim), x.dtype),
        grid=(B, heads),
        in_specs=[
            pl.BlockSpec((1, n, dim), lambda b, h: (b, 0, 0)),           # x
            pl.BlockSpec((1, dim, dim_head), lambda b, h: (h, 0, 0)),    # Wq (scaled)
            pl.BlockSpec((1, dim, dim_head), lambda b, h: (h, 0, 0)),    # Wk
            pl.BlockSpec((1, dim, dim_head), lambda b, h: (h, 0, 0)),    # Wv
            pl.BlockSpec((1, dim_head, dim), lambda b, h: (h, 0, 0)),    # Wo
            pl.BlockSpec((1, dim), lambda b, h: (0, 0)),                 # bias
            pl.BlockSpec((dim_head, w_cols), lambda b, h: (0, 0)),       # rel table
        ],
        out_specs=pl.BlockSpec((1, n, dim), lambda b, h: (b, 0, 0)),
        scratch_shapes=[pltpu.VMEM((n, dim), jnp.float32)],
        compiler_params=pltpu.CompilerParams(
            dimension_semantics=("parallel", "arbitrary"),
            vmem_limit_bytes=32 * 1024 * 1024),
        cost_estimate=cost,
    )(x_bf, wq_h, wk_h, wv_h, wo_h, bo2, et)


def attention_reference(x, params, *, heads, dim_head, max_pos_emb):
    """Pure-JAX f32 reference mirroring the PyTorch forward (self-attn, no mask)."""
    B, n, dim = x.shape
    scale = dim_head ** (-0.5)
    q = x @ params["wq"]
    kv = x @ params["wkv"]
    inner = heads * dim_head
    k, v = kv[..., :inner], kv[..., inner:]

    def split(t):  # b n (h d) -> b h n d
        return t.reshape(B, n, heads, dim_head).transpose(0, 2, 1, 3)

    q, k, v = split(q), split(k), split(v)
    dots = jnp.einsum('bhid,bhjd->bhij', q, k) * scale
    seq = jnp.arange(n)
    dist = jnp.clip(seq[:, None] - seq[None, :], -max_pos_emb, max_pos_emb) + max_pos_emb
    rel = params["rel_pos_emb"][dist]
    pos = jnp.einsum('bhnd,nrd->bhnr', q, rel) * scale
    dots = dots + pos
    attn = jax.nn.softmax(dots, axis=-1)
    out = jnp.einsum('bhij,bhjd->bhid', attn, v)
    out = out.transpose(0, 2, 1, 3).reshape(B, n, inner)
    return out @ params["wo"] + params["bo"]


if __name__ == "__main__":
    # Small, module-consistent shapes.
    B, n, dim = 2, 8, 32
    heads, dim_head, max_pos_emb = 2, 16, 16
    inner = heads * dim_head

    key = jax.random.PRNGKey(0)
    k0, k1, k2, k3, k4, k5 = jax.random.split(key, 6)

    params = {
        "wq":  jax.random.normal(k0, (dim, inner), jnp.float32) * 0.1,
        "wkv": jax.random.normal(k1, (dim, 2 * inner), jnp.float32) * 0.1,
        "wo":  jax.random.normal(k2, (inner, dim), jnp.float32) * 0.1,
        "bo":  jax.random.normal(k3, (dim,), jnp.float32) * 0.1,
        "rel_pos_emb": jax.random.normal(k4, (2 * max_pos_emb + 1, dim_head),
                                         jnp.float32) * 0.1,
    }
    x = jax.random.normal(k5, (B, n, dim), jnp.float32)

    out = attention_forward(x, params, heads=heads, dim_head=dim_head,
                            max_pos_emb=max_pos_emb)
    out = jax.block_until_ready(out)

    ref = attention_reference(x, params, heads=heads, dim_head=dim_head,
                              max_pos_emb=max_pos_emb)
    assert out.shape == (B, n, dim)
    # bf16 MXU operands with f32 accumulation -> ~1e-2-scale tolerance vs f32 ref.
    assert jnp.allclose(out, ref, rtol=3e-2, atol=3e-2), (
        "mismatch vs reference: max abs diff "
        f"{float(jnp.max(jnp.abs(out - ref)))}")

    print("KERNEL_OK")
</pallas_src>

<mosaic_0001>
module attributes {stable_mosaic.version = 11 : i64} {
  func.func @_attention_head_kernel(%arg0: i32, %arg1: i32, %arg2: memref<1x8x32xbf16, #tpu.memory_space<vmem>>, %arg3: memref<1x32x16xbf16, #tpu.memory_space<vmem>>, %arg4: memref<1x32x16xbf16, #tpu.memory_space<vmem>>, %arg5: memref<1x32x16xbf16, #tpu.memory_space<vmem>>, %arg6: memref<1x16x32xbf16, #tpu.memory_space<vmem>>, %arg7: memref<1x32xf32, #tpu.memory_space<vmem>>, %arg8: memref<16x128xbf16, #tpu.memory_space<vmem>>, %arg9: memref<1x8x32xf32, #tpu.memory_space<vmem>>, %arg10: memref<8x32xf32, #tpu.memory_space<vmem>>) attributes {dimension_semantics = [#tpu.dimension_semantics<parallel>, #tpu.dimension_semantics<arbitrary>], iteration_bounds = array<i64: 2, 2>, scalar_prefetch = 0 : i64, scratch_operands = 1 : i64, tpu.core_type = #tpu.core_type<tc>, window_params = [{transform_indices = @transform_0, window_bounds = array<i64: 1, 8, 32>}, {transform_indices = @transform_1, window_bounds = array<i64: 1, 32, 16>}, {transform_indices = @transform_2, window_bounds = array<i64: 1, 32, 16>}, {transform_indices = @transform_3, window_bounds = array<i64: 1, 32, 16>}, {transform_indices = @transform_4, window_bounds = array<i64: 1, 16, 32>}, {pipeline_mode = #tpu.pipeline_mode<synchronous>, transform_indices = @transform_5, window_bounds = array<i64: 1, 32>}, {pipeline_mode = #tpu.pipeline_mode<synchronous>, transform_indices = @transform_6, window_bounds = array<i64: 16, 128>}, {transform_indices = @transform_7, window_bounds = array<i64: 1, 8, 32>}]} {
    %c0 = arith.constant 0 : index
    %c0_0 = arith.constant 0 : index
    %c0_1 = arith.constant 0 : index
    %0 = vector.load %arg2[%c0, %c0_0, %c0_1] : memref<1x8x32xbf16, #tpu.memory_space<vmem>>, vector<1x8x32xbf16>
    %1 = vector.shape_cast %0 : vector<1x8x32xbf16> to vector<8x32xbf16>
    %c0_2 = arith.constant 0 : index
    %c0_3 = arith.constant 0 : index
    %c0_4 = arith.constant 0 : index
    %2 = vector.load %arg3[%c0_2, %c0_3, %c0_4] : memref<1x32x16xbf16, #tpu.memory_space<vmem>>, vector<1x32x16xbf16>
    %3 = vector.shape_cast %2 : vector<1x32x16xbf16> to vector<32x16xbf16>
    %c0_5 = arith.constant 0 : index
    %c0_6 = arith.constant 0 : index
    %c0_7 = arith.constant 0 : index
    %4 = vector.load %arg4[%c0_5, %c0_6, %c0_7] : memref<1x32x16xbf16, #tpu.memory_space<vmem>>, vector<1x32x16xbf16>
    %5 = vector.shape_cast %4 : vector<1x32x16xbf16> to vector<32x16xbf16>
    %c0_8 = arith.constant 0 : index
    %c0_9 = arith.constant 0 : index
    %c0_10 = arith.constant 0 : index
    %6 = vector.load %arg5[%c0_8, %c0_9, %c0_10] : memref<1x32x16xbf16, #tpu.memory_space<vmem>>, vector<1x32x16xbf16>
    %7 = vector.shape_cast %6 : vector<1x32x16xbf16> to vector<32x16xbf16>
    %c0_11 = arith.constant 0 : index
    %c0_12 = arith.constant 0 : index
    %c0_13 = arith.constant 0 : index
    %8 = vector.load %arg6[%c0_11, %c0_12, %c0_13] : memref<1x16x32xbf16, #tpu.memory_space<vmem>>, vector<1x16x32xbf16>
    %9 = vector.shape_cast %8 : vector<1x16x32xbf16> to vector<16x32xbf16>
    %cst = arith.constant dense<0.000000e+00> : vector<8x16xf32>
    %10 = tpu.matmul %1, %3, %cst {dimension_numbers = #tpu.dot_dimension_numbers<[1], [0], [0], [1], [0, 0, 1, 1], [], []>} : vector<8x32xbf16>, vector<32x16xbf16>, vector<8x16xf32> -> vector<8x16xf32>
    %cst_14 = arith.constant dense<0.000000e+00> : vector<8x16xf32>
    %11 = tpu.matmul %1, %5, %cst_14 {dimension_numbers = #tpu.dot_dimension_numbers<[1], [0], [0], [1], [0, 0, 1, 1], [], []>} : vector<8x32xbf16>, vector<32x16xbf16>, vector<8x16xf32> -> vector<8x16xf32>
    %cst_15 = arith.constant dense<0.000000e+00> : vector<8x16xf32>
    %12 = tpu.matmul %1, %7, %cst_15 {dimension_numbers = #tpu.dot_dimension_numbers<[1], [0], [0], [1], [0, 0, 1, 1], [], []>} : vector<8x32xbf16>, vector<32x16xbf16>, vector<8x16xf32> -> vector<8x16xf32>
    %13 = arith.truncf %10 : vector<8x16xf32> to vector<8x16xbf16>
    %14 = arith.truncf %11 : vector<8x16xf32> to vector<8x16xbf16>
    %15 = arith.truncf %12 : vector<8x16xf32> to vector<8x16xbf16>
    "tpu.trace_start"() <{level = 10 : i32, message = "id,jd->ij"}> : () -> ()
    %cst_16 = arith.constant dense<0.000000e+00> : vector<8x8xf32>
    %16 = tpu.matmul %13, %14, %cst_16 {dimension_numbers = #tpu.dot_dimension_numbers<[1], [1], [0], [0], [0, 0, 1, 0], [], []>} : vector<8x16xbf16>, vector<8x16xbf16>, vector<8x8xf32> -> vector<8x8xf32>
    "tpu.trace_stop"() : () -> ()
    %c0_17 = arith.constant 0 : index
    %c0_18 = arith.constant 0 : index
    %17 = vector.load %arg8[%c0_17, %c0_18] : memref<16x128xbf16, #tpu.memory_space<vmem>>, vector<16x128xbf16>
    %cst_19 = arith.constant dense<0.000000e+00> : vector<8x128xf32>
    %18 = tpu.matmul %13, %17, %cst_19 {dimension_numbers = #tpu.dot_dimension_numbers<[1], [0], [0], [1], [0, 0, 1, 1], [], []>} : vector<8x16xbf16>, vector<16x128xbf16>, vector<8x128xf32> -> vector<8x128xf32>
    %19 = tpu.iota {dimensions = array<i32: 0>} : vector<8x1xi32>
    %c1_i32 = arith.constant 1 : i32
    %20 = vector.broadcast %c1_i32 : i32 to vector<8x1xi32>
    %21 = arith.andi %19, %20 : vector<8x1xi32>
    %c0_i32 = arith.constant 0 : i32
    %22 = vector.broadcast %c0_i32 : i32 to vector<8x1xi32>
    %23 = arith.cmpi ne, %21, %22 : vector<8x1xi32>
    %24 = vector.extract_strided_slice %18 {offsets = [0, 127], sizes = [8, 1], strides = [1, 1]} : vector<8x128xf32> to vector<8x1xf32>
    %25 = vector.extract_strided_slice %18 {offsets = [0, 0], sizes = [8, 127], strides = [1, 1]} : vector<8x128xf32> to vector<8x127xf32>
    %26 = tpu.concatenate %24, %25 in 1 : vector<8x1xf32>, vector<8x127xf32> -> vector<8x128xf32>
    %27 = vector.shape_cast %23 : vector<8x1xi1> to vector<8x1xi1>
    %28 = vector.broadcast %27 : vector<8x1xi1> to vector<8x128xi1>
    %29 = arith.select %28, %26, %18 : vector<8x128xi1>, vector<8x128xf32>
    %c2_i32 = arith.constant 2 : i32
    %30 = vector.broadcast %c2_i32 : i32 to vector<8x1xi32>
    %31 = arith.andi %19, %30 : vector<8x1xi32>
    %c0_i32_20 = arith.constant 0 : i32
    %32 = vector.broadcast %c0_i32_20 : i32 to vector<8x1xi32>
    %33 = arith.cmpi ne, %31, %32 : vector<8x1xi32>
    %34 = vector.extract_strided_slice %29 {offsets = [0, 126], sizes = [8, 2], strides = [1, 1]} : vector<8x128xf32> to vector<8x2xf32>
    %35 = vector.extract_strided_slice %29 {offsets = [0, 0], sizes = [8, 126], strides = [1, 1]} : vector<8x128xf32> to vector<8x126xf32>
    %36 = tpu.concatenate %34, %35 in 1 : vector<8x2xf32>, vector<8x126xf32> -> vector<8x128xf32>
    %37 = vector.shape_cast %33 : vector<8x1xi1> to vector<8x1xi1>
    %38 = vector.broadcast %37 : vector<8x1xi1> to vector<8x128xi1>
    %39 = arith.select %38, %36, %29 : vector<8x128xi1>, vector<8x128xf32>
    %c4_i32 = arith.constant 4 : i32
    %40 = vector.broadcast %c4_i32 : i32 to vector<8x1xi32>
    %41 = arith.andi %19, %40 : vector<8x1xi32>
    %c0_i32_21 = arith.constant 0 : i32
    %42 = vector.broadcast %c0_i32_21 : i32 to vector<8x1xi32>
    %43 = arith.cmpi ne, %41, %42 : vector<8x1xi32>
    %44 = vector.extract_strided_slice %39 {offsets = [0, 124], sizes = [8, 4], strides = [1, 1]} : vector<8x128xf32> to vector<8x4xf32>
    %45 = vector.extract_strided_slice %39 {offsets = [0, 0], sizes = [8, 124], strides = [1, 1]} : vector<8x128xf32> to vector<8x124xf32>
    %46 = tpu.concatenate %44, %45 in 1 : vector<8x4xf32>, vector<8x124xf32> -> vector<8x128xf32>
    %47 = vector.shape_cast %43 : vector<8x1xi1> to vector<8x1xi1>
    %48 = vector.broadcast %47 : vector<8x1xi1> to vector<8x128xi1>
    %49 = arith.select %48, %46, %39 : vector<8x128xi1>, vector<8x128xf32>
    %50 = vector.extract_strided_slice %49 {offsets = [0, 0], sizes = [8, 8], strides = [1, 1]} : vector<8x128xf32> to vector<8x8xf32>
    %51 = arith.addf %16, %50 : vector<8x8xf32>
    %cst_22 = arith.constant dense<0xFF800000> : vector<8xf32>
    %52 = vector.multi_reduction <maximumf>, %51, %cst_22 [1] : vector<8x8xf32> to vector<8xf32>
    %53 = vector.shape_cast %52 : vector<8xf32> to vector<8x1xf32>
    %54 = vector.broadcast %53 : vector<8x1xf32> to vector<8x8xf32>
    %55 = arith.subf %51, %54 : vector<8x8xf32>
    %56 = math.exp %55 : vector<8x8xf32>
    %cst_23 = arith.constant dense<0.000000e+00> : vector<8xf32>
    %57 = vector.multi_reduction <add>, %56, %cst_23 [1] : vector<8x8xf32> to vector<8xf32>
    %58 = vector.shape_cast %57 : vector<8xf32> to vector<8x1xf32>
    %59 = tpu.reciprocal %58 {approx = true} : vector<8x1xf32> -> vector<8x1xf32>
    %60 = vector.broadcast %59 : vector<8x1xf32> to vector<8x8xf32>
    %61 = arith.mulf %56, %60 : vector<8x8xf32>
    %62 = arith.truncf %61 : vector<8x8xf32> to vector<8x8xbf16>
    %cst_24 = arith.constant dense<0.000000e+00> : vector<8x16xf32>
    %63 = tpu.matmul %62, %15, %cst_24 {dimension_numbers = #tpu.dot_dimension_numbers<[1], [0], [0], [1], [0, 0, 1, 1], [], []>} : vector<8x8xbf16>, vector<8x16xbf16>, vector<8x16xf32> -> vector<8x16xf32>
    %64 = arith.truncf %63 : vector<8x16xf32> to vector<8x16xbf16>
    %cst_25 = arith.constant dense<0.000000e+00> : vector<8x32xf32>
    %65 = tpu.matmul %64, %9, %cst_25 {dimension_numbers = #tpu.dot_dimension_numbers<[1], [0], [0], [1], [0, 0, 1, 1], [], []>} : vector<8x16xbf16>, vector<16x32xbf16>, vector<8x32xf32> -> vector<8x32xf32>
    %c0_i32_26 = arith.constant 0 : i32
    %66 = arith.cmpi eq, %arg1, %c0_i32_26 : i32
    %67 = arith.extui %66 : i1 to i32
    %c0_i32_27 = arith.constant 0 : i32
    %68 = arith.cmpi ne, %67, %c0_i32_27 : i32
    scf.if %68 {
      %c0_34 = arith.constant 0 : index
      %c0_35 = arith.constant 0 : index
      %75 = vector.load %arg7[%c0_34, %c0_35] : memref<1x32xf32, #tpu.memory_space<vmem>>, vector<1x32xf32>
      %76 = vector.shape_cast %75 : vector<1x32xf32> to vector<1x32xf32>
      %77 = vector.broadcast %76 : vector<1x32xf32> to vector<8x32xf32>
      %c0_36 = arith.constant 0 : index
      %c0_37 = arith.constant 0 : index
      %78 = vector.load %arg10[%c0_36, %c0_37] : memref<8x32xf32, #tpu.memory_space<vmem>>, vector<8x32xf32>
      tpu.vector_store %arg10[%c0_36, %c0_37], %77 {strides = array<i32>} : memref<8x32xf32, #tpu.memory_space<vmem>>, vector<8x32xf32>,
    } else {
    }
    %c0_28 = arith.constant 0 : index
    %c0_29 = arith.constant 0 : index
    %69 = vector.load %arg10[%c0_28, %c0_29] : memref<8x32xf32, #tpu.memory_space<vmem>>, vector<8x32xf32>
    %70 = arith.addf %69, %65 : vector<8x32xf32>
    %c0_30 = arith.constant 0 : index
    %c0_31 = arith.constant 0 : index
    %71 = vector.load %arg10[%c0_30, %c0_31] : memref<8x32xf32, #tpu.memory_space<vmem>>, vector<8x32xf32>
    tpu.vector_store %arg10[%c0_30, %c0_31], %70 {strides = array<i32>} : memref<8x32xf32, #tpu.memory_space<vmem>>, vector<8x32xf32>,
    %c1_i32_32 = arith.constant 1 : i32
    %72 = arith.cmpi eq, %arg1, %c1_i32_32 : i32
    %73 = arith.extui %72 : i1 to i32
    %c0_i32_33 = arith.constant 0 : i32
    %74 = arith.cmpi ne, %73, %c0_i32_33 : i32
    scf.if %74 {
      %c0_34 = arith.constant 0 : index
      %c0_35 = arith.constant 0 : index
      %75 = vector.load %arg10[%c0_34, %c0_35] : memref<8x32xf32, #tpu.memory_space<vmem>>, vector<8x32xf32>
      %c0_36 = arith.constant 0 : index
      %c0_37 = arith.constant 0 : index
      %c0_38 = arith.constant 0 : index
      %76 = vector.load %arg9[%c0_36, %c0_37, %c0_38] : memref<1x8x32xf32, #tpu.memory_space<vmem>>, vector<1x8x32xf32>
      %77 = vector.shape_cast %76 : vector<1x8x32xf32> to vector<8x32xf32>
      %78 = vector.shape_cast %75 : vector<8x32xf32> to vector<1x8x32xf32>
      tpu.vector_store %arg9[%c0_36, %c0_37, %c0_38], %78 {strides = array<i32>} : memref<1x8x32xf32, #tpu.memory_space<vmem>>, vector<1x8x32xf32>,
    } else {
    }
    return
  }
  func.func @transform_0(%arg0: i32, %arg1: i32) -> (i32, i32, i32) {
    %c0_i32 = arith.constant 0 : i32
    %c0_i32_0 = arith.constant 0 : i32
    %c0_i32_1 = arith.constant 0 : i32
    return %arg0, %c0_i32, %c0_i32_0 : i32, i32, i32
  }
  func.func @transform_1(%arg0: i32, %arg1: i32) -> (i32, i32, i32) {
    %c0_i32 = arith.constant 0 : i32
    %c0_i32_0 = arith.constant 0 : i32
    %c0_i32_1 = arith.constant 0 : i32
    return %arg1, %c0_i32, %c0_i32_0 : i32, i32, i32
  }
  func.func @transform_2(%arg0: i32, %arg1: i32) -> (i32, i32, i32) {
    %c0_i32 = arith.constant 0 : i32
    %c0_i32_0 = arith.constant 0 : i32
    %c0_i32_1 = arith.constant 0 : i32
    return %arg1, %c0_i32, %c0_i32_0 : i32, i32, i32
  }
  func.func @transform_3(%arg0: i32, %arg1: i32) -> (i32, i32, i32) {
    %c0_i32 = arith.constant 0 : i32
    %c0_i32_0 = arith.constant 0 : i32
    %c0_i32_1 = arith.constant 0 : i32
    return %arg1, %c0_i32, %c0_i32_0 : i32, i32, i32
  }
  func.func @transform_4(%arg0: i32, %arg1: i32) -> (i32, i32, i32) {
    %c0_i32 = arith.constant 0 : i32
    %c0_i32_0 = arith.constant 0 : i32
    %c0_i32_1 = arith.constant 0 : i32
    return %arg1, %c0_i32, %c0_i32_0 : i32, i32, i32
  }
  func.func @transform_5(%arg0: i32, %arg1: i32) -> (i32, i32) {
    %c0_i32 = arith.constant 0 : i32
    %c0_i32_0 = arith.constant 0 : i32
    %c0_i32_1 = arith.constant 0 : i32
    return %c0_i32, %c0_i32_0 : i32, i32
  }
  func.func @transform_6(%arg0: i32, %arg1: i32) -> (i32, i32) {
    %c0_i32 = arith.constant 0 : i32
    %c0_i32_0 = arith.constant 0 : i32
    %c0_i32_1 = arith.constant 0 : i32
    return %c0_i32, %c0_i32_0 : i32, i32
  }
  func.func @transform_7(%arg0: i32, %arg1: i32) -> (i32, i32, i32) {
    %c0_i32 = arith.constant 0 : i32
    %c0_i32_0 = arith.constant 0 : i32
    %c0_i32_1 = arith.constant 0 : i32
    return %arg0, %c0_i32, %c0_i32_0 : i32, i32, i32
  }
}

</mosaic_0001>

<llo_original>
// kernel: tpu_custom_call.1
$region0: #{tpu_custom_call.1}
  #allocation0 [shape = 'u32[]', space=smem, size = 0x4, offset = 0x4, fixed_abs, tag = 'smem constant byte address 0x4 - core index']
  #allocation1 [shape = 'u32[144,128]{1,0:T(1,128)}', space=vmem, size = 0x12000, scoped, tag = 'internal scratch']
  #allocation2 [shape = 'f32[8,32]{1,0:T(8,128)}', space=vmem, size = 0x1000, scoped, tag = 'scratch operand']
  %s0 = inlined_call_operand.vmem [shape: bf16[2,8,32], index: 0, kind: input, shape index: {}]
  %s1 = inlined_call_operand.vmem [shape: bf16[2,32,16], index: 1, kind: input, shape index: {}]
  %s2 = inlined_call_operand.vmem [shape: bf16[2,32,16], index: 2, kind: input, shape index: {}]
  %s3 = inlined_call_operand.vmem [shape: bf16[2,32,16], index: 3, kind: input, shape index: {}]
  %s4 = inlined_call_operand.vmem [shape: bf16[2,16,32], index: 4, kind: input, shape index: {}]
  %s5 = inlined_call_operand.vmem [shape: f32[1,32], index: 5, kind: input, shape index: {}]
  %s6 = inlined_call_operand.vmem [shape: bf16[16,128], index: 6, kind: input, shape index: {}]
  %s7 = inlined_call_operand.hbm [shape: f32[2,8,32], index: 7, kind: output, shape index: {}]
  %s8 = sld [smem:[#allocation0]]
  $region69: #{tpu_custom_call.1} parent=0
    _
  %s10 = ssub.s32 1, %s8
  %s11 = scalar_select 0, %s10, %s8
  $region1: #{tpu_custom_call.1} parent=0
    #allocation3 [shape = 'u8[8192]{0}', space=vmem, size = 0x2000, scoped, tag = 'output window, operand 0']
    #allocation4 [shape = 's32[2]{0}', space=sflag, size = 0x8, scoped, tag = 'scoped memory for tpu_custom_call.1']
    %12 = vsyncpa [#allocation4], 0
    %s13 = scalar_lea.sflag [#allocation4], 1
    %14 = vsyncpa %s13, 0
    loop: start=0, step=1, limit=6
    $region2: #{tpu_custom_call.1} parent=1 // loop_pre_header
      _
    $region3: #{tpu_custom_call.1} parent=1 // loop_header
      %s16 = sphi 0, %s20
      %p17 = scmp.ge.s32.totalorder %s16, 6
      %s23 = sphi 0, %s35
      %s24 = sphi 0, %s31
      %s25 = sphi 0, %s23
      %s26 = sphi 0, %s24
      %s27 = sphi 0, %s25
      %s28 = sphi 0, %s26
      %s38 = sphi 0, %s40
      %s41 = sphi 0, %s38
      %s42 = sphi 0, %s41
      %s58 = sphi 0, %s42
      %s64 = sphi 0, %s66
      %s67 = sphi 0, %s64
      %s68 = sphi 0, %s67
      %s84 = sphi 0, %s68
      %s90 = sphi 0, %s92
      %s93 = sphi 0, %s90
      %s94 = sphi 0, %s93
      %s110 = sphi 0, %s94
      %s116 = sphi 0, %s118
      %s119 = sphi 0, %s116
      %s120 = sphi 0, %s119
      %s136 = sphi 0, %s120
      %s142 = sphi 0, %s144
      %s145 = sphi 0, %s142
      %s146 = sphi 0, %s145
      %s162 = sphi 0, %s146
      %s166 = sphi 0, %s166
      %s168 = sphi 0, %s166
      %s169 = sphi 0, %s168
      %s183 = sphi 0, %s169
      %s187 = sphi 0, %s187
      %s189 = sphi 0, %s187
      %s190 = sphi 0, %s189
      %s204 = sphi 0, %s190
      %s210 = sphi 0, %s212
      %s213 = sphi 0, %s210
      %s214 = sphi 0, %s213
      %s230 = sphi 0, %s214
    $region4: #{tpu_custom_call.1} parent=1 // loop_header_branch
      %19 = sbr.rel (%p17) target = $region8
    $region5: #{tpu_custom_call.1} parent=1 // loop_body
      %s21 = ssub.s32 %s16, 1
      %s22 = ssub.s32 %s16, 2
      %s29 = sadd.s32 1, %s24
      %p30 = scmp.ge.s32.totalorder %s29, 2
      %s31 = scalar_select %p30, 0, %s29
      %s32 = sadd.s32 1, %s23
      %s33 = scalar_select %p30, %s32, %s23
      %p34 = scmp.ge.s32.totalorder %s33, 2
      %s35 = scalar_select %p34, 0, %s33
      %s36 = ssub.s32 %s23, %s35
      %p37 = scmp.eq.s32.totalorder %s36, 0
      %s39 = sadd.s32 %s38, 1
      %s40 = scalar_select %p37, %s38, %s39
      %p43 = pneg %p37
      %p44 = scmp.eq.s32.totalorder %s16, 3
      %p45 = por %p43, %p44
      %p46 = scmp.ne.s32.totalorder %s38, %s41
      %p47 = scmp.eq.s32.totalorder %s16, 0
      %p48 = por %p46, %p47
      %p49 = scmp.ne.s32.totalorder %s38, %s41
      %p50 = scmp.eq.s32.totalorder %s21, 3
      %p51 = por %p49, %p50
      %p52 = scmp.ne.s32.totalorder %s41, %s42
      %p53 = scmp.eq.s32.totalorder %s21, 0
      %p54 = por %p52, %p53
      %p55 = scmp.ne.s32.totalorder %s41, %s42
      %p56 = scmp.eq.s32.totalorder %s22, 3
      %p57 = por %p55, %p56
      %p59 = scmp.ne.s32.totalorder %s42, %s58
      %p60 = scmp.eq.s32.totalorder %s22, 0
      %p61 = por %p59, %p60
      %s62 = ssub.s32 %s24, %s31
      %p63 = scmp.eq.s32.totalorder %s62, 0
      %s65 = sadd.s32 %s64, 1
      %s66 = scalar_select %p63, %s64, %s65
      %p69 = pneg %p63
      %p70 = scmp.eq.s32.totalorder %s16, 3
      %p71 = por %p69, %p70
      %p72 = scmp.ne.s32.totalorder %s64, %s67
      %p73 = scmp.eq.s32.totalorder %s16, 0
      %p74 = por %p72, %p73
      %p75 = scmp.ne.s32.totalorder %s64, %s67
      %p76 = scmp.eq.s32.totalorder %s21, 3
      %p77 = por %p75, %p76
      %p78 = scmp.ne.s32.totalorder %s67, %s68
      %p79 = scmp.eq.s32.totalorder %s21, 0
      %p80 = por %p78, %p79
      %p81 = scmp.ne.s32.totalorder %s67, %s68
      %p82 = scmp.eq.s32.totalorder %s22, 3
      %p83 = por %p81, %p82
      %p85 = scmp.ne.s32.totalorder %s68, %s84
      %p86 = scmp.eq.s32.totalorder %s22, 0
      %p87 = por %p85, %p86
      %s88 = ssub.s32 %s24, %s31
      %p89 = scmp.eq.s32.totalorder %s88, 0
      %s91 = sadd.s32 %s90, 1
      %s92 = scalar_select %p89, %s90, %s91
      %p95 = pneg %p89
      %p96 = scmp.eq.s32.totalorder %s16, 3
      %p97 = por %p95, %p96
      %p98 = scmp.ne.s32.totalorder %s90, %s93
      %p99 = scmp.eq.s32.totalorder %s16, 0
      %p100 = por %p98, %p99
      %p101 = scmp.ne.s32.totalorder %s90, %s93
      %p102 = scmp.eq.s32.totalorder %s21, 3
      %p103 = por %p101, %p102
      %p104 = scmp.ne.s32.totalorder %s93, %s94
      %p105 = scmp.eq.s32.totalorder %s21, 0
      %p106 = por %p104, %p105
      %p107 = scmp.ne.s32.totalorder %s93, %s94
      %p108 = scmp.eq.s32.totalorder %s22, 3
      %p109 = por %p107, %p108
      %p111 = scmp.ne.s32.totalorder %s94, %s110
      %p112 = scmp.eq.s32.totalorder %s22, 0
      %p113 = por %p111, %p112
      %s114 = ssub.s32 %s24, %s31
      %p115 = scmp.eq.s32.totalorder %s114, 0
      %s117 = sadd.s32 %s116, 1
      %s118 = scalar_select %p115, %s116, %s117
      %p121 = pneg %p115
      %p122 = scmp.eq.s32.totalorder %s16, 3
      %p123 = por %p121, %p122
      %p124 = scmp.ne.s32.totalorder %s116, %s119
      %p125 = scmp.eq.s32.totalorder %s16, 0
      %p126 = por %p124, %p125
      %p127 = scmp.ne.s32.totalorder %s116, %s119
      %p128 = scmp.eq.s32.totalorder %s21, 3
      %p129 = por %p127, %p128
      %p130 = scmp.ne.s32.totalorder %s119, %s120
      %p131 = scmp.eq.s32.totalorder %s21, 0
      %p132 = por %p130, %p131
      %p133 = scmp.ne.s32.totalorder %s119, %s120
      %p134 = scmp.eq.s32.totalorder %s22, 3
      %p135 = por %p133, %p134
      %p137 = scmp.ne.s32.totalorder %s120, %s136
      %p138 = scmp.eq.s32.totalorder %s22, 0
      %p139 = por %p137, %p138
      %s140 = ssub.s32 %s24, %s31
      %p141 = scmp.eq.s32.totalorder %s140, 0
      %s143 = sadd.s32 %s142, 1
      %s144 = scalar_select %p141, %s142, %s143
      %p147 = pneg %p141
      %p148 = scmp.eq.s32.totalorder %s16, 3
      %p149 = por %p147, %p148
      %p150 = scmp.ne.s32.totalorder %s142, %s145
      %p151 = scmp.eq.s32.totalorder %s16, 0
      %p152 = por %p150, %p151
      %p153 = scmp.ne.s32.totalorder %s142, %s145
      %p154 = scmp.eq.s32.totalorder %s21, 3
      %p155 = por %p153, %p154
      %p156 = scmp.ne.s32.totalorder %s145, %s146
      %p157 = scmp.eq.s32.totalorder %s21, 0
      %p158 = por %p156, %p157
      %p159 = scmp.ne.s32.totalorder %s145, %s146
      %p160 = scmp.eq.s32.totalorder %s22, 3
      %p161 = por %p159, %p160
      %p163 = scmp.ne.s32.totalorder %s146, %s162
      %p164 = scmp.eq.s32.totalorder %s22, 0
      %p165 = por %p163, %p164
      %s167 = sadd.s32 %s166, 1
      %p170 = scmp.eq.s32.totalorder %s16, 3
      %p171 = scmp.ne.s32.totalorder %s166, %s168
      %p172 = scmp.eq.s32.totalorder %s16, 0
      %p173 = por %p171, %p172
      %p174 = scmp.ne.s32.totalorder %s166, %s168
      %p175 = scmp.eq.s32.totalorder %s21, 3
      %p176 = por %p174, %p175
      %p177 = scmp.ne.s32.totalorder %s168, %s169
      %p178 = scmp.eq.s32.totalorder %s21, 0
      %p179 = por %p177, %p178
      %p180 = scmp.ne.s32.totalorder %s168, %s169
      %p181 = scmp.eq.s32.totalorder %s22, 3
      %p182 = por %p180, %p181
      %p184 = scmp.ne.s32.totalorder %s169, %s183
      %p185 = scmp.eq.s32.totalorder %s22, 0
      %p186 = por %p184, %p185
      %s188 = sadd.s32 %s187, 1
      %p191 = scmp.eq.s32.totalorder %s16, 3
      %p192 = scmp.ne.s32.totalorder %s187, %s189
      %p193 = scmp.eq.s32.totalorder %s16, 0
      %p194 = por %p192, %p193
      %p195 = scmp.ne.s32.totalorder %s187, %s189
      %p196 = scmp.eq.s32.totalorder %s21, 3
      %p197 = por %p195, %p196
      %p198 = scmp.ne.s32.totalorder %s189, %s190
      %p199 = scmp.eq.s32.totalorder %s21, 0
      %p200 = por %p198, %p199
      %p201 = scmp.ne.s32.totalorder %s189, %s190
      %p202 = scmp.eq.s32.totalorder %s22, 3
      %p203 = por %p201, %p202
      %p205 = scmp.ne.s32.totalorder %s190, %s204
      %p206 = scmp.eq.s32.totalorder %s22, 0
      %p207 = por %p205, %p206
      %s208 = ssub.s32 %s23, %s35
      %p209 = scmp.eq.s32.totalorder %s208, 0
      %s211 = sadd.s32 %s210, 1
      %s212 = scalar_select %p209, %s210, %s211
      %p215 = pneg %p209
      %p216 = scmp.eq.s32.totalorder %s16, 3
      %p217 = por %p215, %p216
      %p218 = scmp.ne.s32.totalorder %s210, %s213
      %p219 = scmp.eq.s32.totalorder %s16, 0
      %p220 = por %p218, %p219
      %p221 = scmp.ne.s32.totalorder %s210, %s213
      %p222 = scmp.eq.s32.totalorder %s21, 3
      %p223 = por %p221, %p222
      %p224 = scmp.ne.s32.totalorder %s213, %s214
      %p225 = scmp.eq.s32.totalorder %s21, 0
      %p226 = por %p224, %p225
      %p227 = scmp.ne.s32.totalorder %s213, %s214
      %p228 = scmp.eq.s32.totalorder %s22, 3
      %p229 = por %p227, %p228
      %p231 = scmp.ne.s32.totalorder %s214, %s230
      %p232 = scmp.eq.s32.totalorder %s22, 0
      %p233 = por %p231, %p232
      %p234 = scmp.le.s32.totalorder 1, %s16
      %p235 = scmp.lt.s32.totalorder %s16, 5
      %p236 = pnand %p234, %p235
      %p237 = pneg %p236
      // Predicated region
      $region9: #{tpu_custom_call.1} parent=5 // pred_check
        _
      $region10: #{tpu_custom_call.1} parent=5 // pred_check_branch
        %239 = sbr.rel (%p236) target = $region12
      $region11: #{tpu_custom_call.1} parent=5 // pred_region
        %s240 = ssub.s32 %s16, 1
        // Predicated region
        $region13: #{tpu_custom_call.1} parent=11 // pred_check
          %p241 = pneg %p179
        $region14: #{tpu_custom_call.1} parent=11 // pred_check_branch
          %243 = sbr.rel (%p241) target = $region16
        $region15: #{tpu_custom_call.1} parent=11 // pred_region
          _
        $region16: #{tpu_custom_call.1} parent=11 // pred_fallthru
          _
        // Predicated region
        $region17: #{tpu_custom_call.1} parent=11 // pred_check
          %p244 = pneg %p200
        $region18: #{tpu_custom_call.1} parent=11 // pred_check_branch
          %246 = sbr.rel (%p244) target = $region20
        $region19: #{tpu_custom_call.1} parent=11 // pred_region
          _
        $region20: #{tpu_custom_call.1} parent=11 // pred_fallthru
          _
      $region12: #{tpu_custom_call.1} parent=5 // pred_fallthru
        _
      %p247 = scmp.lt.s32.totalorder %s16, 4
      // Predicated region
      $region21: #{tpu_custom_call.1} parent=5 // pred_check
        %p248 = pneg %p247
      $region22: #{tpu_custom_call.1} parent=5 // pred_check_branch
        %250 = sbr.rel (%p248) target = $region24
      $region23: #{tpu_custom_call.1} parent=5 // pred_region
        // Predicated region
        $region25: #{tpu_custom_call.1} parent=23 // pred_check
          %p251 = pneg %p48
        $region26: #{tpu_custom_call.1} parent=23 // pred_check_branch
          %253 = sbr.rel (%p251) target = $region28
        $region27: #{tpu_custom_call.1} parent=23 // pred_region
          %p254 = scmp.lt.s32.totalorder %s23, 1
          %s255 = scalar_select %p254, %s23, 1
          %s256 = smul.addr %s255, 4
          %s257 = scalar_lea.vmem %s0, %s256
        $region28: #{tpu_custom_call.1} parent=23 // pred_fallthru
          _
        // Predicated region
        $region29: #{tpu_custom_call.1} parent=23 // pred_check
          %p258 = pneg %p74
        $region30: #{tpu_custom_call.1} parent=23 // pred_check_branch
          %260 = sbr.rel (%p258) target = $region32
        $region31: #{tpu_custom_call.1} parent=23 // pred_region
          %p261 = scmp.lt.s32.totalorder %s24, 1
          %s262 = scalar_select %p261, %s24, 1
          %s263 = smul.addr %s262, 4
          %s264 = smul.addr %s263, 4
          %s265 = scalar_lea.vmem %s1, %s264
        $region32: #{tpu_custom_call.1} parent=23 // pred_fallthru
          _
        // Predicated region
        $region33: #{tpu_custom_call.1} parent=23 // pred_check
          %p266 = pneg %p100
        $region34: #{tpu_custom_call.1} parent=23 // pred_check_branch
          %268 = sbr.rel (%p266) target = $region36
        $region35: #{tpu_custom_call.1} parent=23 // pred_region
          %p269 = scmp.lt.s32.totalorder %s24, 1
          %s270 = scalar_select %p269, %s24, 1
          %s271 = smul.addr %s270, 4
          %s272 = smul.addr %s271, 4
          %s273 = scalar_lea.vmem %s2, %s272
        $region36: #{tpu_custom_call.1} parent=23 // pred_fallthru
          _
        // Predicated region
        $region37: #{tpu_custom_call.1} parent=23 // pred_check
          %p274 = pneg %p126
        $region38: #{tpu_custom_call.1} parent=23 // pred_check_branch
          %276 = sbr.rel (%p274) target = $region40
        $region39: #{tpu_custom_call.1} parent=23 // pred_region
          %p277 = scmp.lt.s32.totalorder %s24, 1
          %s278 = scalar_select %p277, %s24, 1
          %s279 = smul.addr %s278, 4
          %s280 = smul.addr %s279, 4
          %s281 = scalar_lea.vmem %s3, %s280
        $region40: #{tpu_custom_call.1} parent=23 // pred_fallthru
          _
        // Predicated region
        $region41: #{tpu_custom_call.1} parent=23 // pred_check
          %p282 = pneg %p152
        $region42: #{tpu_custom_call.1} parent=23 // pred_check_branch
          %284 = sbr.rel (%p282) target = $region44
        $region43: #{tpu_custom_call.1} parent=23 // pred_region
          %p285 = scmp.lt.s32.totalorder %s24, 1
          %s286 = scalar_select %p285, %s24, 1
          %s287 = smul.addr %s286, 2
          %s288 = smul.addr %s287, 4
          %s289 = scalar_lea.vmem %s4, %s288
        $region44: #{tpu_custom_call.1} parent=23 // pred_fallthru
          _
      $region24: #{tpu_custom_call.1} parent=5 // pred_fallthru
        _
      %p290 = scmp.le.s32.totalorder 1, %s16
      %p291 = scmp.lt.s32.totalorder %s16, 5
      %p292 = pnand %p290, %p291
      %p293 = pneg %p292
      // Predicated region
      $region45: #{tpu_custom_call.1} parent=5 // pred_check
        _
      $region46: #{tpu_custom_call.1} parent=5 // pred_check_branch
        %295 = sbr.rel (%p292) target = $region48
      $region47: #{tpu_custom_call.1} parent=5 // pred_region
        %s296 = ssub.s32 %s16, 1
        %p297 = scmp.lt.s32.totalorder %s25, 1
        %s298 = scalar_select %p297, %s25, 1
        %s299 = smul.addr %s298, 4
        %s300 = scalar_lea.vmem %s0, %s299
        %p301 = pneg %p54
        %p302 = pneg %p51
        %p303 = scmp.lt.s32.totalorder %s26, 1
        %s304 = scalar_select %p303, %s26, 1
        %s305 = smul.addr %s304, 4
        %s306 = smul.addr %s305, 4
        %s307 = scalar_lea.vmem %s1, %s306
        %p308 = pneg %p80
        %p309 = pneg %p77
        %p310 = scmp.lt.s32.totalorder %s26, 1
        %s311 = scalar_select %p310, %s26, 1
        %s312 = smul.addr %s311, 4
        %s313 = smul.addr %s312, 4
        %s314 = scalar_lea.vmem %s2, %s313
        %p315 = pneg %p106
        %p316 = pneg %p103
        %p317 = scmp.lt.s32.totalorder %s26, 1
        %s318 = scalar_select %p317, %s26, 1
        %s319 = smul.addr %s318, 4
        %s320 = smul.addr %s319, 4
        %s321 = scalar_lea.vmem %s3, %s320
        %p322 = pneg %p132
        %p323 = pneg %p129
        %p324 = scmp.lt.s32.totalorder %s26, 1
        %s325 = scalar_select %p324, %s26, 1
        %s326 = smul.addr %s325, 2
        %s327 = smul.addr %s326, 4
        %s328 = scalar_lea.vmem %s4, %s327
        %p329 = pneg %p158
        %p330 = pneg %p155
        %p331 = pneg %p179
        %p332 = pneg %p176
        %p333 = pneg %p200
        %p334 = pneg %p197
        %p335 = pneg %p226
        %p336 = pneg %p223
        %s337 = sand.u32 %s213, 1
        %s338 = scalar_lea.sflag [#allocation4], %s337
        %s339 = sand.u32 %s213, 1
        %s340 = smul.addr %s339, 8
        %s341 = scalar_lea.vmem [#allocation3], %s340
        %p342 = scmp.lt.s32.totalorder %s25, 1
        %s343 = scalar_select %p342, %s25, 1
        %s344 = smul.addr %s343, 4
        %s345 = scalar_lea.vmem %s0, %s344
        %p346 = scmp.lt.s32.totalorder %s26, 1
        %s347 = scalar_select %p346, %s26, 1
        %s348 = smul.addr %s347, 4
        %s349 = smul.addr %s348, 4
        %s350 = scalar_lea.vmem %s1, %s349
        %p351 = scmp.lt.s32.totalorder %s26, 1
        %s352 = scalar_select %p351, %s26, 1
        %s353 = smul.addr %s352, 4
        %s354 = smul.addr %s353, 4
        %s355 = scalar_lea.vmem %s2, %s354
        %p356 = scmp.lt.s32.totalorder %s26, 1
        %s357 = scalar_select %p356, %s26, 1
        %s358 = smul.addr %s357, 4
        %s359 = smul.addr %s358, 4
        %s360 = scalar_lea.vmem %s3, %s359
        %p361 = scmp.lt.s32.totalorder %s26, 1
        %s362 = scalar_select %p361, %s26, 1
        %s363 = smul.addr %s362, 2
        %s364 = smul.addr %s363, 4
        %s365 = scalar_lea.vmem %s4, %s364
        %v367 = vld [vmem:[%s345] sm:$0xf]
        %v368 = vld [vmem:[%s350] sm:$0xf]
        %v369 = vld [vmem:[%s350 + $0x4] sm:$0xf]
        %v370 = vld [vmem:[%s350 + $0x8] sm:$0xf]
        %v371 = vld [vmem:[%s350 + $0xc] sm:$0xf]
        %v372 = vld [vmem:[%s355] sm:$0xf]
        %v373 = vld [vmem:[%s355 + $0x4] sm:$0xf]
        %v374 = vld [vmem:[%s355 + $0x8] sm:$0xf]
        %v375 = vld [vmem:[%s355 + $0xc] sm:$0xf]
        %v376 = vld [vmem:[%s360] sm:$0xf]
        %v377 = vld [vmem:[%s360 + $0x4] sm:$0xf]
        %v378 = vld [vmem:[%s360 + $0x8] sm:$0xf]
        %v379 = vld [vmem:[%s360 + $0xc] sm:$0xf]
        %v380 = vld [vmem:[%s365] sm:$0xf]
        %v381 = vld [vmem:[%s365 + $0x4] sm:$0xf]
        %v386 = vunpack.c.l.b16 %v368
        %v387 = vunpack.c.l.b16 %v369
        %v388 = vunpack.c.l.b16 %v370
        %v389 = vunpack.c.l.b16 %v371
        %v390 = vpack.c.b16 %v387, %v386
        %v391 = vpack.c.b16 %v389, %v388
        %vm394 = vcmask 261120
        %v396 = vsel %vm394, %v367, 0
        %398 = vmatprep.subr.bf16.mxu0 0
        %399 = vmatpush1.bf16.msra.mxu0 0
        %400 = vmatprep.subr.bf16.mxu0 0
        %401 = vmatpush1.bf16.msra.mxu0 0
        %402 = vmatprep.subr.bf16.mxu0 0
        %403 = vmatpush1.bf16.msra.mxu0 0
        %404 = vmatprep.subr.bf16.mxu0 0
        %405 = vmatpush1.bf16.msra.mxu0 0
        %406 = vmatprep.subr.bf16.mxu0 0
        %407 = vmatpush1.bf16.msra.mxu0 0
        %408 = vmatprep.subr.bf16.mxu0 0
        %409 = vmatpush1.bf16.msra.mxu0 0
        %410 = vmatprep.subr.bf16.mxu0 0
        %411 = vmatpush1.bf16.msra.mxu0 %v391
        %412 = vmatprep.subr.bf16.mxu0 0
        %413 = vmatpush1.bf16.msra.mxu0 %v390
        %414 = vmatprep.subr.bf16.mxu0 0
        %415 = vmatpush2.bf16.msra.mxu0 0
        %416 = vmatprep.subr.bf16.mxu0 0
        %417 = vmatpush2.bf16.msra.mxu0 0
        %418 = vmatprep.subr.bf16.mxu0 0
        %419 = vmatpush2.bf16.msra.mxu0 0
        %420 = vmatprep.subr.bf16.mxu0 0
        %421 = vmatpush2.bf16.msra.mxu0 0
        %422 = vmatprep.subr.bf16.mxu0 0
        %423 = vmatpush2.bf16.msra.mxu0 0
        %424 = vmatprep.subr.bf16.mxu0 0
        %425 = vmatpush2.bf16.msra.mxu0 0
        %426 = vmatprep.subr.bf16.mxu0 0
        %427 = vmatpush2.bf16.msra.mxu0 0
        %428 = vmatprep.subr.bf16.mxu0 0
        %429 = vmatpush2.bf16.msra.mxu0 0
        %430 = vmatprep.mubr.bf16.mxu0 0
        %431 = vmatmul.mubr.bf16.gmra.mxu0 %v396
        %v432 = vpop.f32.mrf.mxu0
        %v433 = vadd.f32 0.0, %v432
        %v434 = vpop.f32.mrf.mxu0
        %v435 = vpop.f32.mrf.mxu0
        %v436 = vpop.f32.mrf.mxu0
        %437 = vdwg.mxu0
        %v442 = vunpack.c.l.b16 %v372
        %v443 = vunpack.c.l.b16 %v373
        %v444 = vunpack.c.l.b16 %v374
        %v445 = vunpack.c.l.b16 %v375
        %v446 = vpack.c.b16 %v443, %v442
        %v447 = vpack.c.b16 %v445, %v444
        %450 = vmatprep.subr.bf16.mxu0 0
        %451 = vmatpush1.bf16.msra.mxu0 0
        %452 = vmatprep.subr.bf16.mxu0 0
        %453 = vmatpush1.bf16.msra.mxu0 0
        %454 = vmatprep.subr.bf16.mxu0 0
        %455 = vmatpush1.bf16.msra.mxu0 0
        %456 = vmatprep.subr.bf16.mxu0 0
        %457 = vmatpush1.bf16.msra.mxu0 0
        %458 = vmatprep.subr.bf16.mxu0 0
        %459 = vmatpush1.bf16.msra.mxu0 0
        %460 = vmatprep.subr.bf16.mxu0 0
        %461 = vmatpush1.bf16.msra.mxu0 0
        %462 = vmatprep.subr.bf16.mxu0 0
        %463 = vmatpush1.bf16.msra.mxu0 %v447
        %464 = vmatprep.subr.bf16.mxu0 0
        %465 = vmatpush1.bf16.msra.mxu0 %v446
        %466 = vmatprep.subr.bf16.mxu0 0
        %467 = vmatpush2.bf16.msra.mxu0 0
        %468 = vmatprep.subr.bf16.mxu0 0
        %469 = vmatpush2.bf16.msra.mxu0 0
        %470 = vmatprep.subr.bf16.mxu0 0
        %471 = vmatpush2.bf16.msra.mxu0 0
        %472 = vmatprep.subr.bf16.mxu0 0
        %473 = vmatpush2.bf16.msra.mxu0 0
        %474 = vmatprep.subr.bf16.mxu0 0
        %475 = vmatpush2.bf16.msra.mxu0 0
        %476 = vmatprep.subr.bf16.mxu0 0
        %477 = vmatpush2.bf16.msra.mxu0 0
        %478 = vmatprep.subr.bf16.mxu0 0
        %479 = vmatpush2.bf16.msra.mxu0 0
        %480 = vmatprep.subr.bf16.mxu0 0
        %481 = vmatpush2.bf16.msra.mxu0 0
        %482 = vmatprep.mubr.bf16.mxu0 0
        %483 = vmatmul.mubr.bf16.gmra.mxu0 %v396
        %v484 = vpop.f32.mrf.mxu0
        %v485 = vadd.f32 0.0, %v484
        %v486 = vpop.f32.mrf.mxu0
        %v487 = vpop.f32.mrf.mxu0
        %v488 = vpop.f32.mrf.mxu0
        %489 = vdwg.mxu0
        %v494 = vunpack.c.l.b16 %v376
        %v495 = vunpack.c.l.b16 %v377
        %v496 = vunpack.c.l.b16 %v378
        %v497 = vunpack.c.l.b16 %v379
        %v498 = vpack.c.b16 %v495, %v494
        %v499 = vpack.c.b16 %v497, %v496
        %502 = vmatprep.subr.bf16.mxu0 0
        %503 = vmatpush1.bf16.msra.mxu0 0
        %504 = vmatprep.subr.bf16.mxu0 0
        %505 = vmatpush1.bf16.msra.mxu0 0
        %506 = vmatprep.subr.bf16.mxu0 0
        %507 = vmatpush1.bf16.msra.mxu0 0
        %508 = vmatprep.subr.bf16.mxu0 0
        %509 = vmatpush1.bf16.msra.mxu0 0
        %510 = vmatprep.subr.bf16.mxu0 0
        %511 = vmatpush1.bf16.msra.mxu0 0
        %512 = vmatprep.subr.bf16.mxu0 0
        %513 = vmatpush1.bf16.msra.mxu0 0
        %514 = vmatprep.subr.bf16.mxu0 0
        %515 = vmatpush1.bf16.msra.mxu0 %v499
        %516 = vmatprep.subr.bf16.mxu0 0
        %517 = vmatpush1.bf16.msra.mxu0 %v498
        %518 = vmatprep.subr.bf16.mxu0 0
        %519 = vmatpush2.bf16.msra.mxu0 0
        %520 = vmatprep.subr.bf16.mxu0 0
        %521 = vmatpush2.bf16.msra.mxu0 0
        %522 = vmatprep.subr.bf16.mxu0 0
        %523 = vmatpush2.bf16.msra.mxu0 0
        %524 = vmatprep.subr.bf16.mxu0 0
        %525 = vmatpush2.bf16.msra.mxu0 0
        %526 = vmatprep.subr.bf16.mxu0 0
        %527 = vmatpush2.bf16.msra.mxu0 0
        %528 = vmatprep.subr.bf16.mxu0 0
        %529 = vmatpush2.bf16.msra.mxu0 0
        %530 = vmatprep.subr.bf16.mxu0 0
        %531 = vmatpush2.bf16.msra.mxu0 0
        %532 = vmatprep.subr.bf16.mxu0 0
        %533 = vmatpush2.bf16.msra.mxu0 0
        %534 = vmatprep.mubr.bf16.mxu0 0
        %535 = vmatmul.mubr.bf16.gmra.mxu0 %v396
        %v536 = vpop.f32.mrf.mxu0
        %v537 = vadd.f32 0.0, %v536
        %v538 = vpop.f32.mrf.mxu0
        %v539 = vpop.f32.mrf.mxu0
        %v540 = vpop.f32.mrf.mxu0
        %541 = vdwg.mxu0
        %v542 = vpack.c.bf16 %v433, %v433
        %v543 = vpack.c.bf16 %v485, %v485
        %v544 = vpack.c.bf16 %v537, %v537
        %v545 = vld [vmem:[%s6] sm:$0xf]
        %v546 = vld [vmem:[%s6 + $0x4] sm:$0xf]
        %v549 = vunpack.c.l.b16 %v545
        %v550 = vunpack.c.l.b16 %v546
        %v551 = vpack.c.b16 %v550, %v549
        %vm553 = vcmask 130048
        %v555 = vsel %vm553, %v542, 0
        %557 = vmatprep.subr.bf16.mxu0 0
        %558 = vmatpush1.bf16.msra.mxu0 0
        %559 = vmatprep.subr.bf16.mxu0 0
        %560 = vmatpush1.bf16.msra.mxu0 0
        %561 = vmatprep.subr.bf16.mxu0 0
        %562 = vmatpush1.bf16.msra.mxu0 0
        %563 = vmatprep.subr.bf16.mxu0 0
        %564 = vmatpush1.bf16.msra.mxu0 0
        %565 = vmatprep.subr.bf16.mxu0 0
        %566 = vmatpush1.bf16.msra.mxu0 0
        %567 = vmatprep.subr.bf16.mxu0 0
        %568 = vmatpush1.bf16.msra.mxu0 0
        %569 = vmatprep.subr.bf16.mxu0 0
        %570 = vmatpush1.bf16.msra.mxu0 0
        %571 = vmatprep.subr.bf16.mxu0 0
        %572 = vmatpush1.bf16.msra.mxu0 %v551
        %573 = vmatprep.subr.bf16.mxu0 0
        %574 = vmatpush2.bf16.msra.mxu0 0
        %575 = vmatprep.subr.bf16.mxu0 0
        %576 = vmatpush2.bf16.msra.mxu0 0
        %577 = vmatprep.subr.bf16.mxu0 0
        %578 = vmatpush2.bf16.msra.mxu0 0
        %579 = vmatprep.subr.bf16.mxu0 0
        %580 = vmatpush2.bf16.msra.mxu0 0
        %581 = vmatprep.subr.bf16.mxu0 0
        %582 = vmatpush2.bf16.msra.mxu0 0
        %583 = vmatprep.subr.bf16.mxu0 0
        %584 = vmatpush2.bf16.msra.mxu0 0
        %585 = vmatprep.subr.bf16.mxu0 0
        %586 = vmatpush2.bf16.msra.mxu0 0
        %587 = vmatprep.subr.bf16.mxu0 0
        %588 = vmatpush2.bf16.msra.mxu0 0
        %589 = vmatprep.mubr.bf16.mxu0 0
        %590 = vmatmul.mubr.bf16.gmra.mxu0 %v555
        %v591 = vpop.f32.mrf.mxu0
        %v592 = vadd.f32 0.0, %v591
        %v593 = vpop.f32.mrf.mxu0
        %v594 = vpop.f32.mrf.mxu0
        %v595 = vpop.f32.mrf.mxu0
        %596 = vdwg.mxu0
        %v597 = vlaneseq
        %v598 = vshrl.u32 %v597, 7
        %v599 = vand.u32 %v598, 1
        %vm600 = vcmp.ne.s32.totalorder %v599, 0
        %602 = vrot.lane.b32.xlu0 %v592, 1
        %v603 = vpop.permute.xlu0 %602
        %v605 = vsel %vm600, 1, 0
        %vm606 = vcmp.eq.s32.totalorder %v605, 1
        %v607 = vsel %vm606, %v603, %v592
        %v608 = vand.u32 %v598, 2
        %vm609 = vcmp.ne.s32.totalorder %v608, 0
        %611 = vrot.lane.b32.xlu0 %v607, 2
        %v612 = vpop.permute.xlu0 %611
        %v614 = vsel %vm609, 1, 0
        %vm615 = vcmp.eq.s32.totalorder %v614, 1
        %v616 = vsel %vm615, %v612, %v607
        %v617 = vand.u32 %v598, 4
        %vm618 = vcmp.ne.s32.totalorder %v617, 0
        %620 = vrot.lane.b32.xlu0 %v616, 4
        %v621 = vpop.permute.xlu0 %620
        %v623 = vsel %vm618, 1, 0
        %vm624 = vcmp.eq.s32.totalorder %v623, 1
        %v625 = vsel %vm624, %v621, %v616
        %v627 = vsel %vm553, %v543, 0
        %629 = vmatprep.subr.bf16.mxu0 0
        %630 = vmatpush1.bf16.xpose.msra.mxu0 0
        %631 = vmatprep.subr.bf16.mxu0 0
        %632 = vmatpush1.bf16.xpose.msra.mxu0 0
        %633 = vmatprep.subr.bf16.mxu0 0
        %634 = vmatpush1.bf16.xpose.msra.mxu0 0
        %635 = vmatprep.subr.bf16.mxu0 0
        %636 = vmatpush1.bf16.xpose.msra.mxu0 0
        %637 = vmatprep.subr.bf16.mxu0 0
        %638 = vmatpush1.bf16.xpose.msra.mxu0 0
        %639 = vmatprep.subr.bf16.mxu0 0
        %640 = vmatpush1.bf16.xpose.msra.mxu0 0
        %641 = vmatprep.subr.bf16.mxu0 0
        %642 = vmatpush1.bf16.xpose.msra.mxu0 0
        %643 = vmatprep.subr.bf16.mxu0 0
        %644 = vmatpush1.bf16.xpose.msra.mxu0 %v627
        %645 = vmatprep.subr.bf16.mxu0 0
        %646 = vmatpush2.bf16.xpose.msra.mxu0 0
        %647 = vmatprep.subr.bf16.mxu0 0
        %648 = vmatpush2.bf16.xpose.msra.mxu0 0
        %649 = vmatprep.subr.bf16.mxu0 0
        %650 = vmatpush2.bf16.xpose.msra.mxu0 0
        %651 = vmatprep.subr.bf16.mxu0 0
        %652 = vmatpush2.bf16.xpose.msra.mxu0 0
        %653 = vmatprep.subr.bf16.mxu0 0
        %654 = vmatpush2.bf16.xpose.msra.mxu0 0
        %655 = vmatprep.subr.bf16.mxu0 0
        %656 = vmatpush2.bf16.xpose.msra.mxu0 0
        %657 = vmatprep.subr.bf16.mxu0 0
        %658 = vmatpush2.bf16.xpose.msra.mxu0 0
        %659 = vmatprep.subr.bf16.mxu0 0
        %660 = vmatpush2.bf16.xpose.msra.mxu0 0
        %661 = vmatprep.mubr.bf16.mxu0 0
        %662 = vmatmul.mubr.bf16.gmra.mxu0 %v555
        %v663 = vpop.f32.mrf.mxu0
        %v664 = vadd.f32 %v625, %v663
        %v665 = vpop.f32.mrf.mxu0
        %v666 = vpop.f32.mrf.mxu0
        %v667 = vpop.f32.mrf.mxu0
        %668 = vdwg.mxu0
        %vm669 = vcmask 64512
        %v670 = vsel %vm669, %v664, -inf
        %671 = vmax.xlane.f32.xlu0 %v670
        %v672 = vpop.xlane.xlu0 %671
        %v673 = vsub.f32 %v664, %v672
        %v674 = vmul.f32 %v673, 1.442695
        %v675 = vpow.pop %v674
        %v676 = vsel %vm669, %v675, 0.0
        %677 = vadd.xlane.f32.xlu0 %v676
        %v678 = vpop.xlane.xlu0 %677
        %v679 = vrcp.pop %v678
        %v680 = vmul.f32 %v675, %v679
        %v681 = vpack.c.bf16 %v680, %v680
        %v683 = vsel %vm669, %v681, 0
        %vm685 = vcmask 1043456
        %v687 = vsel %vm685, %v544, 0
        %689 = vmatprep.subr.bf16.mxu0 0
        %690 = vmatpush1.bf16.msra.mxu0 0
        %691 = vmatprep.subr.bf16.mxu0 0
        %692 = vmatpush1.bf16.msra.mxu0 0
        %693 = vmatprep.subr.bf16.mxu0 0
        %694 = vmatpush1.bf16.msra.mxu0 0
        %695 = vmatprep.subr.bf16.mxu0 0
        %696 = vmatpush1.bf16.msra.mxu0 0
        %697 = vmatprep.subr.bf16.mxu0 0
        %698 = vmatpush1.bf16.msra.mxu0 0
        %699 = vmatprep.subr.bf16.mxu0 0
        %700 = vmatpush1.bf16.msra.mxu0 0
        %701 = vmatprep.subr.bf16.mxu0 0
        %702 = vmatpush1.bf16.msra.mxu0 0
        %703 = vmatprep.subr.bf16.mxu0 0
        %704 = vmatpush1.bf16.msra.mxu0 %v687
        %705 = vmatprep.subr.bf16.mxu0 0
        %706 = vmatpush2.bf16.msra.mxu0 0
        %707 = vmatprep.subr.bf16.mxu0 0
        %708 = vmatpush2.bf16.msra.mxu0 0
        %709 = vmatprep.subr.bf16.mxu0 0
        %710 = vmatpush2.bf16.msra.mxu0 0
        %711 = vmatprep.subr.bf16.mxu0 0
        %712 = vmatpush2.bf16.msra.mxu0 0
        %713 = vmatprep.subr.bf16.mxu0 0
        %714 = vmatpush2.bf16.msra.mxu0 0
        %715 = vmatprep.subr.bf16.mxu0 0
        %716 = vmatpush2.bf16.msra.mxu0 0
        %717 = vmatprep.subr.bf16.mxu0 0
        %718 = vmatpush2.bf16.msra.mxu0 0
        %719 = vmatprep.subr.bf16.mxu0 0
        %720 = vmatpush2.bf16.msra.mxu0 0
        %721 = vmatprep.mubr.bf16.mxu0 0
        %722 = vmatmul.mubr.bf16.gmra.mxu0 %v683
        %v723 = vpop.f32.mrf.mxu0
        %v724 = vadd.f32 0.0, %v723
        %v725 = vpop.f32.mrf.mxu0
        %v726 = vpop.f32.mrf.mxu0
        %v727 = vpop.f32.mrf.mxu0
        %728 = vdwg.mxu0
        %v729 = vpack.c.bf16 %v724, %v724
        %v732 = vunpack.c.l.b16 %v380
        %v733 = vunpack.c.l.b16 %v381
        %v734 = vpack.c.b16 %v733, %v732
        %v737 = vsel %vm553, %v729, 0
        %739 = vmatprep.subr.bf16.mxu0 0
        %740 = vmatpush1.bf16.msra.mxu0 0
        %741 = vmatprep.subr.bf16.mxu0 0
        %742 = vmatpush1.bf16.msra.mxu0 0
        %743 = vmatprep.subr.bf16.mxu0 0
        %744 = vmatpush1.bf16.msra.mxu0 0
        %745 = vmatprep.subr.bf16.mxu0 0
        %746 = vmatpush1.bf16.msra.mxu0 0
        %747 = vmatprep.subr.bf16.mxu0 0
        %748 = vmatpush1.bf16.msra.mxu0 0
        %749 = vmatprep.subr.bf16.mxu0 0
        %750 = vmatpush1.bf16.msra.mxu0 0
        %751 = vmatprep.subr.bf16.mxu0 0
        %752 = vmatpush1.bf16.msra.mxu0 0
        %753 = vmatprep.subr.bf16.mxu0 0
        %754 = vmatpush1.bf16.msra.mxu0 %v734
        %755 = vmatprep.subr.bf16.mxu0 0
        %756 = vmatpush2.bf16.msra.mxu0 0
        %757 = vmatprep.subr.bf16.mxu0 0
        %758 = vmatpush2.bf16.msra.mxu0 0
        %759 = vmatprep.subr.bf16.mxu0 0
        %760 = vmatpush2.bf16.msra.mxu0 0
        %761 = vmatprep.subr.bf16.mxu0 0
        %762 = vmatpush2.bf16.msra.mxu0 0
        %763 = vmatprep.subr.bf16.mxu0 0
        %764 = vmatpush2.bf16.msra.mxu0 0
        %765 = vmatprep.subr.bf16.mxu0 0
        %766 = vmatpush2.bf16.msra.mxu0 0
        %767 = vmatprep.subr.bf16.mxu0 0
        %768 = vmatpush2.bf16.msra.mxu0 0
        %769 = vmatprep.subr.bf16.mxu0 0
        %770 = vmatpush2.bf16.msra.mxu0 0
        %771 = vmatprep.mubr.bf16.mxu0 0
        %772 = vmatmul.mubr.bf16.gmra.mxu0 %v737
        %v773 = vpop.f32.mrf.mxu0
        %v774 = vadd.f32 0.0, %v773
        %v775 = vpop.f32.mrf.mxu0
        %v776 = vpop.f32.mrf.mxu0
        %v777 = vpop.f32.mrf.mxu0
        %778 = vdwg.mxu0
        %p779 = scmp.eq.s32.totalorder %s26, 0
        // Predicated region
        $region49: #{tpu_custom_call.1} parent=47 // pred_check
          %p780 = pneg %p779
        $region50: #{tpu_custom_call.1} parent=47 // pred_check_branch
          %782 = sbr.rel (%p780) target = $region52
        $region51: #{tpu_custom_call.1} parent=47 // pred_region
          %v783 = vld [vmem:[%s5] sm:$0x1]
          %v785 = vlaneseq
          %v786 = vshrl.u32 %v785, 7
          %v787 = vsub.s32 0, %v786
          %v788 = vrot.slane %v783, %v787
          %790 = vst.msk [vmem:[#allocation2] sm:$0xff] %vm394, %v788
        $region52: #{tpu_custom_call.1} parent=47 // pred_fallthru
          _
        %v791 = vld [vmem:[#allocation2] sm:$0xff]
        %v792 = vadd.f32 %v791, %v774
        %793 = vst.msk [vmem:[#allocation2] sm:$0xff] %vm394, %v792
        %p794 = scmp.eq.s32.totalorder %s26, 1
        // Predicated region
        $region53: #{tpu_custom_call.1} parent=47 // pred_check
          %p795 = pneg %p794
        $region54: #{tpu_custom_call.1} parent=47 // pred_check_branch
          %797 = sbr.rel (%p795) target = $region56
        $region55: #{tpu_custom_call.1} parent=47 // pred_region
          %v798 = vld [vmem:[#allocation2] sm:$0xff]
          %799 = vst.msk [vmem:[%s341] sm:$0xff] %vm394, %v798
        $region56: #{tpu_custom_call.1} parent=47 // pred_fallthru
          _
        %s800 = sand.u32 %s213, 1
        %s801 = scalar_lea.sflag [#allocation4], %s800
        %s802 = sand.u32 %s213, 1
        %s803 = smul.addr %s802, 8
        %s804 = scalar_lea.vmem [#allocation3], %s803
        // Predicated region
        $region57: #{tpu_custom_call.1} parent=47 // pred_check
          %p805 = pneg %p223
        $region58: #{tpu_custom_call.1} parent=47 // pred_check_branch
          %807 = sbr.rel (%p805) target = $region60
        $region59: #{tpu_custom_call.1} parent=47 // pred_region
          %s809 = ssub.s32 128, 128
          %810 = vsyncadd %s801, %s809
          %s811 = smul.addr %s25, 128
          %s812 = scalar_lea.hbm %s7, %s811
          %s814 = sshll.u32 %s804, 4
          %s815 = int_to_ptr.vmem [resolvable:$true] %s814
          %817 = dma.vmem_to_hbm [thread:$0]  %s815, 128, %s812, %s801
        $region60: #{tpu_custom_call.1} parent=47 // pred_fallthru
          _
      $region48: #{tpu_custom_call.1} parent=5 // pred_fallthru
        _
      %p818 = scmp.le.s32.totalorder 2, %s16
      // Predicated region
      $region61: #{tpu_custom_call.1} parent=5 // pred_check
        %p819 = pneg %p818
      $region62: #{tpu_custom_call.1} parent=5 // pred_check_branch
        %821 = sbr.rel (%p819) target = $region64
      $region63: #{tpu_custom_call.1} parent=5 // pred_region
        %s822 = ssub.s32 %s16, 2
        // Predicated region
        $region65: #{tpu_custom_call.1} parent=63 // pred_check
          %p823 = pneg %p229
        $region66: #{tpu_custom_call.1} parent=63 // pred_check_branch
          %825 = sbr.rel (%p823) target = $region68
        $region67: #{tpu_custom_call.1} parent=63 // pred_region
          %s826 = sand.u32 %s214, 1
          %s827 = scalar_lea.sflag [#allocation4], %s826
          %s828 = sand.u32 %s214, 1
          %s829 = smul.addr %s828, 8
          %s830 = scalar_lea.vmem [#allocation3], %s829
          %831 = dma.done %s827, 128
        $region68: #{tpu_custom_call.1} parent=63 // pred_fallthru
          _
      $region64: #{tpu_custom_call.1} parent=5 // pred_fallthru
        _
    $region6: #{tpu_custom_call.1} parent=1 // loop_footer
      %s20 = sadd.s32 1, %s16
    $region7: #{tpu_custom_call.1} parent=1 // loop_footer_branch
      %15 = sbr.rel target = $region3
    $region8: #{tpu_custom_call.1} parent=1 // loop_exit
      _
    %832 = vsyncpa [#allocation4], 1
    %s833 = scalar_lea.sflag [#allocation4], 1
    %834 = vsyncpa %s833, 1

</llo_original>
